<compile_context>
chip_gen: v7x
topology: tpu7x:2x2x1
jax: 0.10.0
libtpu: 0.0.40
codegen_flags: <defaults>
</compile_context>

<pallas_src>
import functools

import jax
import jax.numpy as jnp
from jax.experimental import pallas as pl
from jax.experimental.pallas import tpu as pltpu


def _round_up(n, m):
    return ((n + m - 1) // m) * m


def _largest_divisor_tile(total, cap, quantum):
    """Largest multiple of `quantum` that divides `total` and is <= cap."""
    cap = max(quantum, min(cap, total))
    t = (cap // quantum) * quantum
    while t > quantum and total % t != 0:
        t -= quantum
    return max(t, quantum)


def _generator_kernel(x_ref, w1_ref, b1_ref, w2_ref, b2_ref, o_ref):
    # layer 1: Linear(z_dim, 128-padded hidden) + bias + ReLU (f32 accumulation)
    h = jnp.dot(x_ref[...], w1_ref[...], preferred_element_type=jnp.float32)
    h = jnp.maximum(h + b1_ref[...].astype(jnp.float32), 0.0)
    # layer 2: Linear(hidden, out column tile) + bias
    out = jnp.dot(h.astype(w2_ref.dtype), w2_ref[...],
                  preferred_element_type=jnp.float32)
    o_ref[...] = (out + b2_ref[...].astype(jnp.float32)).astype(o_ref.dtype)


def prepare_params(w1, b1, w2, b2, *, dtype=None):
    """One-time padding of the Generator params into kernel-friendly layout.

    w1: (z_dim, hidden), b1: (hidden,), w2: (hidden, input_dim), b2: (input_dim,)
    Returns (w1_p, b1_p, w2_p, b2_p) with hidden padded to 128 lanes and the
    output dim padded to a multiple of 128 only when it is >128 and unaligned.
    """
    z_dim, hidden = w1.shape
    hidden2, input_dim = w2.shape
    assert hidden2 == hidden and b1.shape == (hidden,) and b2.shape == (input_dim,)
    if dtype is None:
        dtype = w1.dtype

    h_pad = _round_up(max(hidden, 128), 128)            # 35 -> 128 (one vreg)
    if input_dim <= 128 or input_dim % 128 == 0:
        n_pad = input_dim                                # no lane padding
    else:
        n_pad = _round_up(input_dim, 128)

    w1_p = jnp.zeros((z_dim, h_pad), dtype).at[:, :hidden].set(w1.astype(dtype))
    b1_p = jnp.zeros((1, h_pad), dtype).at[0, :hidden].set(b1.astype(dtype))
    w2_p = jnp.zeros((h_pad, n_pad), dtype).at[:hidden, :input_dim].set(w2.astype(dtype))
    b2_p = jnp.zeros((1, n_pad), dtype).at[0, :input_dim].set(b2.astype(dtype))
    return w1_p, b1_p, w2_p, b2_p


@functools.partial(jax.jit,
                   static_argnames=("input_dim", "tile_b", "force_pallas"))
def generator_forward(x, w1_p, b1_p, w2_p, b2_p, *, input_dim,
                      tile_b=512, force_pallas=False):
    """x: (B, z_dim) -> (B, input_dim), two fused Linear layers with ReLU."""
    B, z_dim = x.shape
    zp, h_pad = w1_p.shape
    h_pad2, n_total = w2_p.shape
    assert zp == z_dim and h_pad2 == h_pad
    dtype = x.dtype
    itemsize = jnp.dtype(dtype).itemsize

    # ---- small-problem fallback: launch overhead beats the custom kernel ----
    if not force_pallas and B <= 128:
        h = jnp.maximum(
            jnp.dot(x, w1_p, preferred_element_type=jnp.float32)
            + b1_p.astype(jnp.float32), 0.0)
        out = jnp.dot(h.astype(w2_p.dtype), w2_p,
                      preferred_element_type=jnp.float32)
        out = (out + b2_p.astype(jnp.float32)).astype(dtype)
        return out[:, :input_dim] if n_total != input_dim else out

    # ---- batch tiling: pad only to the sublane quantum, tile divides it -----
    quantum = 8 if itemsize >= 4 else (16 if itemsize == 2 else 32)
    b_pad = _round_up(B, quantum)
    cap = min(tile_b, b_pad)
    if b_pad >= 2 * quantum:
        # ensure >= 2 batch tiles so "parallel" can use both v7x TensorCores
        cap = min(cap, max(quantum, (b_pad // 2 // quantum) * quantum))
    eff_tile_b = _largest_divisor_tile(b_pad, cap, quantum)

    # ---- output column tiling (only when the output is large & 128-aligned) -
    if n_total % 128 == 0 and n_total > 512:
        tile_n = _largest_divisor_tile(n_total, 512, 128)
    else:
        tile_n = n_total

    # ---- VMEM budget from the actual block sizes ----------------------------
    def _blk_bytes(tb):
        return (tb * z_dim                         # x tile
                + z_dim * h_pad + h_pad            # w1, b1 (VMEM-resident)
                + h_pad * tile_n + tile_n          # w2 / b2 column tile
                + tb * tile_n                      # output tile
                ) * itemsize

    while eff_tile_b > quantum and 2 * _blk_bytes(eff_tile_b) > (40 << 20):
        eff_tile_b = _largest_divisor_tile(b_pad, eff_tile_b - quantum, quantum)
    vmem_limit = int(min(max(2 * _blk_bytes(eff_tile_b) + (4 << 20), 16 << 20),
                         64 << 20))

    # ---- pad the batch only when needed (single cheap pass, <= quantum rows)
    x_p = x if b_pad == B else jnp.zeros((b_pad, z_dim), dtype).at[:B, :].set(x)

    grid = (b_pad // eff_tile_b, n_total // tile_n)

    out_p = pl.pallas_call(
        _generator_kernel,
        out_shape=jax.ShapeDtypeStruct((b_pad, n_total), dtype),
        grid=grid,
        in_specs=[
            # batch tile of the input, pipelined across the grid
            pl.BlockSpec((eff_tile_b, z_dim), lambda i, j: (i, 0)),
            # layer-1 weights / bias: same block every grid step (VMEM resident)
            pl.BlockSpec((z_dim, h_pad), lambda i, j: (0, 0)),
            pl.BlockSpec((1, h_pad), lambda i, j: (0, 0)),
            # layer-2 weights / bias: column-tiled with the output
            pl.BlockSpec((h_pad, tile_n), lambda i, j: (0, j)),
            pl.BlockSpec((1, tile_n), lambda i, j: (0, j)),
        ],
        out_specs=pl.BlockSpec((eff_tile_b, tile_n), lambda i, j: (i, j)),
        compiler_params=pltpu.CompilerParams(
            dimension_semantics=("parallel", "parallel"),
            vmem_limit_bytes=vmem_limit),
    )(x_p, w1_p, b1_p, w2_p, b2_p)

    out = out_p if b_pad == B else out_p[:B]
    if n_total != input_dim:
        out = out[:, :input_dim]
    return out


def init_generator_params(key, z_dim, input_dim, hidden=35, dtype=jnp.float32):
    """Deterministic synthetic init (uniform, like PyTorch's default range)."""
    k1, k2, k3, k4 = jax.random.split(key, 4)
    lim1 = 1.0 / (z_dim ** 0.5)
    lim2 = 1.0 / (hidden ** 0.5)
    w1 = jax.random.uniform(k1, (z_dim, hidden), dtype, -lim1, lim1)
    b1 = jax.random.uniform(k2, (hidden,), dtype, -lim1, lim1)
    w2 = jax.random.uniform(k3, (hidden, input_dim), dtype, -lim2, lim2)
    b2 = jax.random.uniform(k4, (input_dim,), dtype, -lim2, lim2)
    return w1, b1, w2, b2


if __name__ == "__main__":
    batch, z_dim, input_dim = 64, 16, 32

    key = jax.random.PRNGKey(0)
    kx, kp = jax.random.split(key)
    x = jax.random.normal(kx, (batch, z_dim), jnp.float32)
    w1, b1, w2, b2 = init_generator_params(kp, z_dim, input_dim)

    ref = jnp.maximum(x @ w1 + b1, 0.0) @ w2 + b2

    # --- f32 Pallas path ------------------------------------------------------
    p32 = prepare_params(w1, b1, w2, b2)
    out = generator_forward(x, *p32, input_dim=input_dim, force_pallas=True)
    out = jax.block_until_ready(out)
    assert out.shape == (batch, input_dim)
    assert jnp.allclose(out, ref, atol=1e-5, rtol=1e-5), "f32 mismatch vs reference"

    # --- small-problem XLA fallback (no Pallas launch) ------------------------
    out_fb = jax.block_until_ready(
        generator_forward(x, *p32, input_dim=input_dim))
    assert jnp.allclose(out_fb, ref, atol=1e-5, rtol=1e-5), "fallback mismatch"

    # --- bf16 storage path (halves HBM bytes on v6e/v7x; f32 accumulation) ----
    pbf = prepare_params(w1, b1, w2, b2, dtype=jnp.bfloat16)
    out_bf = generator_forward(x.astype(jnp.bfloat16), *pbf,
                               input_dim=input_dim, force_pallas=True)
    out_bf = jax.block_until_ready(out_bf)
    xb, w1b, b1b, w2b, b2b = (a.astype(jnp.bfloat16).astype(jnp.float32)
                              for a in (x, w1, b1, w2, b2))
    ref_bf = jnp.maximum(xb @ w1b + b1b, 0.0) @ w2b + b2b
    assert out_bf.dtype == jnp.bfloat16
    assert jnp.allclose(out_bf.astype(jnp.float32), ref_bf,
                        atol=3e-2, rtol=3e-2), "bf16 mismatch vs reference"

    print("KERNEL_OK")
</pallas_src>

<mosaic_0001>
module attributes {stable_mosaic.version = 11 : i64} {
  func.func @_generator_kernel(%arg0: i32, %arg1: i32, %arg2: memref<32x16xf32, #tpu.memory_space<vmem>>, %arg3: memref<16x128xf32, #tpu.memory_space<vmem>>, %arg4: memref<1x128xf32, #tpu.memory_space<vmem>>, %arg5: memref<128x32xf32, #tpu.memory_space<vmem>>, %arg6: memref<1x32xf32, #tpu.memory_space<vmem>>, %arg7: memref<32x32xf32, #tpu.memory_space<vmem>>) attributes {dimension_semantics = [#tpu.dimension_semantics<parallel>, #tpu.dimension_semantics<parallel>], iteration_bounds = array<i64: 2, 1>, scalar_prefetch = 0 : i64, scratch_operands = 0 : i64, tpu.core_type = #tpu.core_type<tc>, window_params = [{transform_indices = @transform_0, window_bounds = array<i64: 32, 16>}, {pipeline_mode = #tpu.pipeline_mode<synchronous>, transform_indices = @transform_1, window_bounds = array<i64: 16, 128>}, {pipeline_mode = #tpu.pipeline_mode<synchronous>, transform_indices = @transform_2, window_bounds = array<i64: 1, 128>}, {transform_indices = @transform_3, window_bounds = array<i64: 128, 32>}, {transform_indices = @transform_4, window_bounds = array<i64: 1, 32>}, {transform_indices = @transform_5, window_bounds = array<i64: 32, 32>}]} {
    %c0 = arith.constant 0 : index
    %c0_0 = arith.constant 0 : index
    %0 = vector.load %arg2[%c0, %c0_0] : memref<32x16xf32, #tpu.memory_space<vmem>>, vector<32x16xf32>
    %c0_1 = arith.constant 0 : index
    %c0_2 = arith.constant 0 : index
    %1 = vector.load %arg3[%c0_1, %c0_2] : memref<16x128xf32, #tpu.memory_space<vmem>>, vector<16x128xf32>
    %cst = arith.constant dense<0.000000e+00> : vector<32x128xf32>
    %2 = tpu.matmul %0, %1, %cst {dimension_numbers = #tpu.dot_dimension_numbers<[1], [0], [0], [1], [0, 0, 1, 1], [], []>} : vector<32x16xf32>, vector<16x128xf32>, vector<32x128xf32> -> vector<32x128xf32>
    %c0_3 = arith.constant 0 : index
    %c0_4 = arith.constant 0 : index
    %3 = vector.load %arg4[%c0_3, %c0_4] : memref<1x128xf32, #tpu.memory_space<vmem>>, vector<1x128xf32>
    %4 = vector.broadcast %3 : vector<1x128xf32> to vector<32x128xf32>
    %5 = arith.addf %2, %4 : vector<32x128xf32>
    %cst_5 = arith.constant 0.000000e+00 : f32
    %6 = vector.broadcast %cst_5 : f32 to vector<32x128xf32>
    %7 = arith.maximumf %5, %6 : vector<32x128xf32>
    %c0_6 = arith.constant 0 : index
    %c0_7 = arith.constant 0 : index
    %8 = vector.load %arg5[%c0_6, %c0_7] : memref<128x32xf32, #tpu.memory_space<vmem>>, vector<128x32xf32>
    %cst_8 = arith.constant dense<0.000000e+00> : vector<32x32xf32>
    %9 = tpu.matmul %7, %8, %cst_8 {dimension_numbers = #tpu.dot_dimension_numbers<[1], [0], [0], [1], [0, 0, 1, 1], [], []>} : vector<32x128xf32>, vector<128x32xf32>, vector<32x32xf32> -> vector<32x32xf32>
    %c0_9 = arith.constant 0 : index
    %c0_10 = arith.constant 0 : index
    %10 = vector.load %arg6[%c0_9, %c0_10] : memref<1x32xf32, #tpu.memory_space<vmem>>, vector<1x32xf32>
    %11 = vector.broadcast %10 : vector<1x32xf32> to vector<32x32xf32>
    %12 = arith.addf %9, %11 : vector<32x32xf32>
    %c0_11 = arith.constant 0 : index
    %c0_12 = arith.constant 0 : index
    %13 = vector.load %arg7[%c0_11, %c0_12] : memref<32x32xf32, #tpu.memory_space<vmem>>, vector<32x32xf32>
    tpu.vector_store %arg7[%c0_11, %c0_12], %12 {strides = array<i32>} : memref<32x32xf32, #tpu.memory_space<vmem>>, vector<32x32xf32>,
    return
  }
  func.func @transform_0(%arg0: i32, %arg1: i32) -> (i32, i32) {
    %c0_i32 = arith.constant 0 : i32
    %c0_i32_0 = arith.constant 0 : i32
    return %arg0, %c0_i32 : i32, i32
  }
  func.func @transform_1(%arg0: i32, %arg1: i32) -> (i32, i32) {
    %c0_i32 = arith.constant 0 : i32
    %c0_i32_0 = arith.constant 0 : i32
    %c0_i32_1 = arith.constant 0 : i32
    return %c0_i32, %c0_i32_0 : i32, i32
  }
  func.func @transform_2(%arg0: i32, %arg1: i32) -> (i32, i32) {
    %c0_i32 = arith.constant 0 : i32
    %c0_i32_0 = arith.constant 0 : i32
    %c0_i32_1 = arith.constant 0 : i32
    return %c0_i32, %c0_i32_0 : i32, i32
  }
  func.func @transform_3(%arg0: i32, %arg1: i32) -> (i32, i32) {
    %c0_i32 = arith.constant 0 : i32
    %c0_i32_0 = arith.constant 0 : i32
    return %c0_i32, %arg1 : i32, i32
  }
  func.func @transform_4(%arg0: i32, %arg1: i32) -> (i32, i32) {
    %c0_i32 = arith.constant 0 : i32
    %c0_i32_0 = arith.constant 0 : i32
    return %c0_i32, %arg1 : i32, i32
  }
  func.func @transform_5(%arg0: i32, %arg1: i32) -> (i32, i32) {
    %c0_i32 = arith.constant 0 : i32
    return %arg0, %arg1 : i32, i32
  }
}

</mosaic_0001>

<llo_original>
// kernel: generator_forward.1
$region0: #{generator_forward.1}
  #allocation0 [shape = 'u32[]', space=smem, size = 0x4, offset = 0x4, fixed_abs, tag = 'smem constant byte address 0x4 - core index']
  #allocation1 [shape = 'u32[144,128]{1,0:T(1,128)}', space=vmem, size = 0x12000, scoped, tag = 'internal scratch']
  %s0 = inlined_call_operand.vmem [shape: f32[64,16], index: 0, kind: input, shape index: {}]
  %s1 = inlined_call_operand.vmem [shape: f32[16,128], index: 1, kind: input, shape index: {}]
  %s2 = inlined_call_operand.vmem [shape: f32[1,128], index: 2, kind: input, shape index: {}]
  %s3 = inlined_call_operand.vmem [shape: f32[128,32], index: 3, kind: input, shape index: {}]
  %s4 = inlined_call_operand.vmem [shape: f32[1,32], index: 4, kind: input, shape index: {}]
  %s5 = inlined_call_operand.vmem [shape: f32[64,32], index: 5, kind: output, shape index: {}]
  %s6 = sld [smem:[#allocation0]]
  $region53: #{generator_forward.1} parent=0
    _
  %s8 = ssub.s32 1, %s6
  %s9 = scalar_select 0, %s8, %s6
  loop: start=0, step=1, limit=4
  $region2: #{generator_forward.1} parent=0 // loop_pre_header
    _
  $region3: #{generator_forward.1} parent=0 // loop_header
    %s11 = sphi 0, %s15
    %p12 = scmp.ge.s32.totalorder %s11, 4
    %s18 = sphi 0, %s30
    %s19 = sphi 0, %s26
    %s20 = sphi 0, %s18
    %s21 = sphi 0, %s19
    %s22 = sphi 0, %s20
    %s23 = sphi 0, %s21
    %s33 = sphi 0, %s35
    %s36 = sphi 0, %s33
    %s37 = sphi 0, %s36
    %s53 = sphi 0, %s37
    %s57 = sphi 0, %s57
    %s59 = sphi 0, %s57
    %s60 = sphi 0, %s59
    %s74 = sphi 0, %s60
    %s78 = sphi 0, %s78
    %s80 = sphi 0, %s78
    %s81 = sphi 0, %s80
    %s95 = sphi 0, %s81
    %s101 = sphi 0, %s103
    %s104 = sphi 0, %s101
    %s105 = sphi 0, %s104
    %s121 = sphi 0, %s105
    %s127 = sphi 0, %s129
    %s130 = sphi 0, %s127
    %s131 = sphi 0, %s130
    %s147 = sphi 0, %s131
    %s155 = sphi 0, %s157
    %s158 = sphi 0, %s155
    %s159 = sphi 0, %s158
    %s175 = sphi 0, %s159
  $region4: #{generator_forward.1} parent=0 // loop_header_branch
    %14 = sbr.rel (%p12) target = $region8
  $region5: #{generator_forward.1} parent=0 // loop_body
    %s16 = ssub.s32 %s11, 1
    %s17 = ssub.s32 %s11, 2
    %s24 = sadd.s32 1, %s19
    %p25 = scmp.ge.s32.totalorder %s24, 1
    %s26 = scalar_select %p25, 0, %s24
    %s27 = sadd.s32 1, %s18
    %s28 = scalar_select %p25, %s27, %s18
    %p29 = scmp.ge.s32.totalorder %s28, 2
    %s30 = scalar_select %p29, 0, %s28
    %s31 = ssub.s32 %s18, %s30
    %p32 = scmp.eq.s32.totalorder %s31, 0
    %s34 = sadd.s32 %s33, 1
    %s35 = scalar_select %p32, %s33, %s34
    %p38 = pneg %p32
    %p39 = scmp.eq.s32.totalorder %s11, 1
    %p40 = por %p38, %p39
    %p41 = scmp.ne.s32.totalorder %s33, %s36
    %p42 = scmp.eq.s32.totalorder %s11, 0
    %p43 = por %p41, %p42
    %p44 = scmp.ne.s32.totalorder %s33, %s36
    %p45 = scmp.eq.s32.totalorder %s16, 1
    %p46 = por %p44, %p45
    %p47 = scmp.ne.s32.totalorder %s36, %s37
    %p48 = scmp.eq.s32.totalorder %s16, 0
    %p49 = por %p47, %p48
    %p50 = scmp.ne.s32.totalorder %s36, %s37
    %p51 = scmp.eq.s32.totalorder %s17, 1
    %p52 = por %p50, %p51
    %p54 = scmp.ne.s32.totalorder %s37, %s53
    %p55 = scmp.eq.s32.totalorder %s17, 0
    %p56 = por %p54, %p55
    %s58 = sadd.s32 %s57, 1
    %p61 = scmp.eq.s32.totalorder %s11, 1
    %p62 = scmp.ne.s32.totalorder %s57, %s59
    %p63 = scmp.eq.s32.totalorder %s11, 0
    %p64 = por %p62, %p63
    %p65 = scmp.ne.s32.totalorder %s57, %s59
    %p66 = scmp.eq.s32.totalorder %s16, 1
    %p67 = por %p65, %p66
    %p68 = scmp.ne.s32.totalorder %s59, %s60
    %p69 = scmp.eq.s32.totalorder %s16, 0
    %p70 = por %p68, %p69
    %p71 = scmp.ne.s32.totalorder %s59, %s60
    %p72 = scmp.eq.s32.totalorder %s17, 1
    %p73 = por %p71, %p72
    %p75 = scmp.ne.s32.totalorder %s60, %s74
    %p76 = scmp.eq.s32.totalorder %s17, 0
    %p77 = por %p75, %p76
    %s79 = sadd.s32 %s78, 1
    %p82 = scmp.eq.s32.totalorder %s11, 1
    %p83 = scmp.ne.s32.totalorder %s78, %s80
    %p84 = scmp.eq.s32.totalorder %s11, 0
    %p85 = por %p83, %p84
    %p86 = scmp.ne.s32.totalorder %s78, %s80
    %p87 = scmp.eq.s32.totalorder %s16, 1
    %p88 = por %p86, %p87
    %p89 = scmp.ne.s32.totalorder %s80, %s81
    %p90 = scmp.eq.s32.totalorder %s16, 0
    %p91 = por %p89, %p90
    %p92 = scmp.ne.s32.totalorder %s80, %s81
    %p93 = scmp.eq.s32.totalorder %s17, 1
    %p94 = por %p92, %p93
    %p96 = scmp.ne.s32.totalorder %s81, %s95
    %p97 = scmp.eq.s32.totalorder %s17, 0
    %p98 = por %p96, %p97
    %s99 = ssub.s32 %s19, %s26
    %p100 = scmp.eq.s32.totalorder %s99, 0
    %s102 = sadd.s32 %s101, 1
    %s103 = scalar_select %p100, %s101, %s102
    %p106 = pneg %p100
    %p107 = scmp.eq.s32.totalorder %s11, 1
    %p108 = por %p106, %p107
    %p109 = scmp.ne.s32.totalorder %s101, %s104
    %p110 = scmp.eq.s32.totalorder %s11, 0
    %p111 = por %p109, %p110
    %p112 = scmp.ne.s32.totalorder %s101, %s104
    %p113 = scmp.eq.s32.totalorder %s16, 1
    %p114 = por %p112, %p113
    %p115 = scmp.ne.s32.totalorder %s104, %s105
    %p116 = scmp.eq.s32.totalorder %s16, 0
    %p117 = por %p115, %p116
    %p118 = scmp.ne.s32.totalorder %s104, %s105
    %p119 = scmp.eq.s32.totalorder %s17, 1
    %p120 = por %p118, %p119
    %p122 = scmp.ne.s32.totalorder %s105, %s121
    %p123 = scmp.eq.s32.totalorder %s17, 0
    %p124 = por %p122, %p123
    %s125 = ssub.s32 %s19, %s26
    %p126 = scmp.eq.s32.totalorder %s125, 0
    %s128 = sadd.s32 %s127, 1
    %s129 = scalar_select %p126, %s127, %s128
    %p132 = pneg %p126
    %p133 = scmp.eq.s32.totalorder %s11, 1
    %p134 = por %p132, %p133
    %p135 = scmp.ne.s32.totalorder %s127, %s130
    %p136 = scmp.eq.s32.totalorder %s11, 0
    %p137 = por %p135, %p136
    %p138 = scmp.ne.s32.totalorder %s127, %s130
    %p139 = scmp.eq.s32.totalorder %s16, 1
    %p140 = por %p138, %p139
    %p141 = scmp.ne.s32.totalorder %s130, %s131
    %p142 = scmp.eq.s32.totalorder %s16, 0
    %p143 = por %p141, %p142
    %p144 = scmp.ne.s32.totalorder %s130, %s131
    %p145 = scmp.eq.s32.totalorder %s17, 1
    %p146 = por %p144, %p145
    %p148 = scmp.ne.s32.totalorder %s131, %s147
    %p149 = scmp.eq.s32.totalorder %s17, 0
    %p150 = por %p148, %p149
    %s151 = ssub.s32 %s18, %s30
    %s152 = ssub.s32 %s19, %s26
    %s153 = sor.u32 %s151, %s152
    %p154 = scmp.eq.s32.totalorder %s153, 0
    %s156 = sadd.s32 %s155, 1
    %s157 = scalar_select %p154, %s155, %s156
    %p160 = pneg %p154
    %p161 = scmp.eq.s32.totalorder %s11, 1
    %p162 = por %p160, %p161
    %p163 = scmp.ne.s32.totalorder %s155, %s158
    %p164 = scmp.eq.s32.totalorder %s11, 0
    %p165 = por %p163, %p164
    %p166 = scmp.ne.s32.totalorder %s155, %s158
    %p167 = scmp.eq.s32.totalorder %s16, 1
    %p168 = por %p166, %p167
    %p169 = scmp.ne.s32.totalorder %s158, %s159
    %p170 = scmp.eq.s32.totalorder %s16, 0
    %p171 = por %p169, %p170
    %p172 = scmp.ne.s32.totalorder %s158, %s159
    %p173 = scmp.eq.s32.totalorder %s17, 1
    %p174 = por %p172, %p173
    %p176 = scmp.ne.s32.totalorder %s159, %s175
    %p177 = scmp.eq.s32.totalorder %s17, 0
    %p178 = por %p176, %p177
    %p179 = scmp.le.s32.totalorder 1, %s11
    %p180 = scmp.lt.s32.totalorder %s11, 3
    %p181 = pnand %p179, %p180
    %p182 = pneg %p181
    // Predicated region
    $region9: #{generator_forward.1} parent=5 // pred_check
      _
    $region10: #{generator_forward.1} parent=5 // pred_check_branch
      %184 = sbr.rel (%p181) target = $region12
    $region11: #{generator_forward.1} parent=5 // pred_region
      %s185 = ssub.s32 %s11, 1
      // Predicated region
      $region13: #{generator_forward.1} parent=11 // pred_check
        %p186 = pneg %p70
      $region14: #{generator_forward.1} parent=11 // pred_check_branch
        %188 = sbr.rel (%p186) target = $region16
      $region15: #{generator_forward.1} parent=11 // pred_region
        _
      $region16: #{generator_forward.1} parent=11 // pred_fallthru
        _
      // Predicated region
      $region17: #{generator_forward.1} parent=11 // pred_check
        %p189 = pneg %p91
      $region18: #{generator_forward.1} parent=11 // pred_check_branch
        %191 = sbr.rel (%p189) target = $region20
      $region19: #{generator_forward.1} parent=11 // pred_region
        _
      $region20: #{generator_forward.1} parent=11 // pred_fallthru
        _
      // Predicated region
      $region21: #{generator_forward.1} parent=11 // pred_check
        %p192 = pneg %p117
      $region22: #{generator_forward.1} parent=11 // pred_check_branch
        %194 = sbr.rel (%p192) target = $region24
      $region23: #{generator_forward.1} parent=11 // pred_region
        %p195 = scmp.lt.s32.totalorder %s21, 0
        %s196 = scalar_select %p195, %s21, 0
        %s197 = smul.addr %s196, 8
        %s198 = scalar_lea.vmem %s3, %s197
      $region24: #{generator_forward.1} parent=11 // pred_fallthru
        _
      // Predicated region
      $region25: #{generator_forward.1} parent=11 // pred_check
        %p199 = pneg %p143
      $region26: #{generator_forward.1} parent=11 // pred_check_branch
        %201 = sbr.rel (%p199) target = $region28
      $region27: #{generator_forward.1} parent=11 // pred_region
        %p202 = scmp.lt.s32.totalorder %s21, 0
        %s203 = scalar_select %p202, %s21, 0
        %s204 = scalar_lea.vmem %s4, %s203
      $region28: #{generator_forward.1} parent=11 // pred_fallthru
        _
    $region12: #{generator_forward.1} parent=5 // pred_fallthru
      _
    %p205 = scmp.lt.s32.totalorder %s11, 2
    // Predicated region
    $region29: #{generator_forward.1} parent=5 // pred_check
      %p206 = pneg %p205
    $region30: #{generator_forward.1} parent=5 // pred_check_branch
      %208 = sbr.rel (%p206) target = $region32
    $region31: #{generator_forward.1} parent=5 // pred_region
      // Predicated region
      $region33: #{generator_forward.1} parent=31 // pred_check
        %p209 = pneg %p43
      $region34: #{generator_forward.1} parent=31 // pred_check_branch
        %211 = sbr.rel (%p209) target = $region36
      $region35: #{generator_forward.1} parent=31 // pred_region
        %s212 = smul.u32 4, %s18
        %p213 = scmp.lt.s32.totalorder %s212, 7
        %s214 = scalar_select %p213, %s212, 7
        %s215 = smul.addr %s214, 8
        %s216 = scalar_lea.vmem %s0, %s215
        %s217 = smul.u32 4, %s18
      $region36: #{generator_forward.1} parent=31 // pred_fallthru
        _
    $region32: #{generator_forward.1} parent=5 // pred_fallthru
      _
    %p218 = scmp.le.s32.totalorder 1, %s11
    %p219 = scmp.lt.s32.totalorder %s11, 3
    %p220 = pnand %p218, %p219
    %p221 = pneg %p220
    // Predicated region
    $region37: #{generator_forward.1} parent=5 // pred_check
      _
    $region38: #{generator_forward.1} parent=5 // pred_check_branch
      %223 = sbr.rel (%p220) target = $region40
    $region39: #{generator_forward.1} parent=5 // pred_region
      %s224 = ssub.s32 %s11, 1
      %s225 = smul.u32 4, %s20
      %p226 = scmp.lt.s32.totalorder %s225, 7
      %s227 = scalar_select %p226, %s225, 7
      %s228 = smul.addr %s227, 8
      %s229 = scalar_lea.vmem %s0, %s228
      %p230 = pneg %p49
      %p231 = pneg %p46
      %p232 = pneg %p70
      %p233 = pneg %p67
      %p234 = pneg %p91
      %p235 = pneg %p88
      %p236 = scmp.lt.s32.totalorder %s21, 0
      %s237 = scalar_select %p236, %s21, 0
      %s238 = smul.addr %s237, 8
      %s239 = scalar_lea.vmem %s3, %s238
      %p240 = pneg %p117
      %p241 = pneg %p114
      %p242 = scmp.lt.s32.totalorder %s21, 0
      %s243 = scalar_select %p242, %s21, 0
      %s244 = scalar_lea.vmem %s4, %s243
      %p245 = pneg %p143
      %p246 = pneg %p140
      %p247 = pneg %p171
      %p248 = pneg %p168
      %s249 = smul.u32 4, %s20
      %p250 = scmp.lt.s32.totalorder %s249, 7
      %s251 = scalar_select %p250, %s249, 7
      %p252 = scmp.lt.s32.totalorder %s21, 0
      %s253 = scalar_select %p252, %s21, 0
      %s254 = sadd.s32 %s253, %s251
      %s255 = smul.addr %s254, 8
      %s256 = scalar_lea.vmem %s5, %s255
      %s257 = smul.u32 4, %s20
      %p258 = scmp.lt.s32.totalorder %s257, 7
      %s259 = scalar_select %p258, %s257, 7
      %s260 = smul.addr %s259, 8
      %s261 = scalar_lea.vmem %s0, %s260
      %s262 = smul.u32 4, %s20
      %p263 = scmp.lt.s32.totalorder %s21, 0
      %s264 = scalar_select %p263, %s21, 0
      %s265 = smul.addr %s264, 8
      %s266 = scalar_lea.vmem %s3, %s265
      %p267 = scmp.lt.s32.totalorder %s21, 0
      %s268 = scalar_select %p267, %s21, 0
      %s269 = scalar_lea.vmem %s4, %s268
      %s270 = smul.u32 4, %s20
      %p271 = scmp.lt.s32.totalorder %s270, 7
      %s272 = scalar_select %p271, %s270, 7
      %p273 = scmp.lt.s32.totalorder %s21, 0
      %s274 = scalar_select %p273, %s21, 0
      %s275 = sadd.s32 %s274, %s272
      %s276 = smul.addr %s275, 8
      %s277 = scalar_lea.vmem %s5, %s276
      %s278 = smul.u32 4, %s20
      %v279 = vld [vmem:[%s261] sm:$0xff]
      %v280 = vld [vmem:[%s261 + $0x8] sm:$0xff]
      %v281 = vld [vmem:[%s261 + $0x10] sm:$0xff]
      %v282 = vld [vmem:[%s261 + $0x18] sm:$0xff]
      %v283 = vld [vmem:[%s1] sm:$0xff]
      %v284 = vld [vmem:[%s1 + $0x8] sm:$0xff]
      %v285 = vld [vmem:[%s2] sm:$0x1]
      %v287 = vlaneseq
      %v288 = vshrl.u32 %v287, 7
      %v289 = vsub.s32 0, %v288
      %v290 = vrot.slane %v285, %v289
      %vm292 = vcmask 130048
      %v294 = vsel %vm292, %v279, 0
      %v297 = vsel %vm292, %v280, 0
      %v300 = vsel %vm292, %v281, 0
      %v303 = vsel %vm292, %v282, 0
      %305 = vmatprep.subr.mxu0 0.0
      %306 = vmatpush1.msra.mxu0 %v283
      %307 = vmatprep.subr.mxu0 0.0
      %308 = vmatpush1.msra.mxu0 %v284
      %309 = vmatprep.subr.mxu0 0.0
      %310 = vmatpush1.msra.mxu0 0.0
      %311 = vmatprep.subr.mxu0 0.0
      %312 = vmatpush1.msra.mxu0 0.0
      %313 = vmatprep.subr.mxu0 0.0
      %314 = vmatpush1.msra.mxu0 0.0
      %315 = vmatprep.subr.mxu0 0.0
      %316 = vmatpush1.msra.mxu0 0.0
      %317 = vmatprep.subr.mxu0 0.0
      %318 = vmatpush1.msra.mxu0 0.0
      %319 = vmatprep.subr.mxu0 0.0
      %320 = vmatpush1.msra.mxu0 0.0
      %321 = vmatprep.subr.mxu0 0.0
      %322 = vmatpush1.msra.mxu0 0.0
      %323 = vmatprep.subr.mxu0 0.0
      %324 = vmatpush1.msra.mxu0 0.0
      %325 = vmatprep.subr.mxu0 0.0
      %326 = vmatpush1.msra.mxu0 0.0
      %327 = vmatprep.subr.mxu0 0.0
      %328 = vmatpush1.msra.mxu0 0.0
      %329 = vmatprep.subr.mxu0 0.0
      %330 = vmatpush1.msra.mxu0 0.0
      %331 = vmatprep.subr.mxu0 0.0
      %332 = vmatpush1.msra.mxu0 0.0
      %333 = vmatprep.subr.mxu0 0.0
      %334 = vmatpush1.msra.mxu0 0.0
      %335 = vmatprep.subr.mxu0 0.0
      %336 = vmatpush1.msra.mxu0 0.0
      %337 = vmatprep.subr.mxu0 0.0
      %338 = vmatpush1.msra.mxu0 0.0
      %339 = vmatprep.subr.mxu0 0.0
      %340 = vmatpush1.msra.mxu0 0.0
      %341 = vmatprep.subr.mxu0 0.0
      %342 = vmatpush1.msra.mxu0 0.0
      %343 = vmatprep.subr.mxu0 0.0
      %344 = vmatpush1.msra.mxu0 0.0
      %345 = vmatprep.subr.mxu0 0.0
      %346 = vmatpush1.msra.mxu0 0.0
      %347 = vmatprep.subr.mxu0 0.0
      %348 = vmatpush1.msra.mxu0 0.0
      %349 = vmatprep.subr.mxu0 0.0
      %350 = vmatpush1.msra.mxu0 0.0
      %351 = vmatprep.subr.mxu0 0.0
      %352 = vmatpush1.msra.mxu0 0.0
      %353 = vmatprep.subr.mxu0 0.0
      %354 = vmatpush1.msra.mxu0 0.0
      %355 = vmatprep.subr.mxu0 0.0
      %356 = vmatpush1.msra.mxu0 0.0
      %357 = vmatprep.subr.mxu0 0.0
      %358 = vmatpush1.msra.mxu0 0.0
      %359 = vmatprep.subr.mxu0 0.0
      %360 = vmatpush1.msra.mxu0 0.0
      %361 = vmatprep.subr.mxu0 0.0
      %362 = vmatpush1.msra.mxu0 0.0
      %363 = vmatprep.subr.mxu0 0.0
      %364 = vmatpush1.msra.mxu0 0.0
      %365 = vmatprep.subr.mxu0 0.0
      %366 = vmatpush1.msra.mxu0 0.0
      %367 = vmatprep.subr.mxu0 0.0
      %368 = vmatpush1.msra.mxu0 0.0
      %369 = vmatprep.mubr.f32.mxu0 0.0
      %370 = vmatmul.mubr.f32.gmra.mrb[0].mxu0 %v294
      %v371 = vpop.f32.mrb[0].mxu0
      %v372 = vadd.f32 %v290, %v371
      %v373 = vpop.f32.mrb[0].mxu0
      %374 = vmatprep.mubr.f32.mxu0 0.0
      %375 = vmatmul.mubr.f32.gmra.mrb[0].mxu0 %v297
      %v376 = vpop.f32.mrb[0].mxu0
      %v377 = vadd.f32 %v290, %v376
      %v378 = vpop.f32.mrb[0].mxu0
      %379 = vmatprep.mubr.f32.mxu0 0.0
      %380 = vmatmul.mubr.f32.gmra.mrb[0].mxu0 %v300
      %v381 = vpop.f32.mrb[0].mxu0
      %v382 = vadd.f32 %v290, %v381
      %v383 = vpop.f32.mrb[0].mxu0
      %384 = vmatprep.mubr.f32.mxu0 0.0
      %385 = vmatmul.mubr.f32.gmra.mrb[0].mxu0 %v303
      %v386 = vpop.f32.mrb[0].mxu0
      %v387 = vadd.f32 %v290, %v386
      %v388 = vpop.f32.mrb[0].mxu0
      %389 = vdwg.mxu0
      %v390 = vmax.f32 %v372, 0.0
      %v391 = vmax.f32 %v377, 0.0
      %v392 = vmax.f32 %v382, 0.0
      %v393 = vmax.f32 %v387, 0.0
      %v394 = vld [vmem:[%s266] sm:$0xff]
      %v395 = vld [vmem:[%s266 + $0x8] sm:$0xff]
      %v396 = vld [vmem:[%s266 + $0x10] sm:$0xff]
      %v397 = vld [vmem:[%s266 + $0x18] sm:$0xff]
      %v398 = vld [vmem:[%s266 + $0x20] sm:$0xff]
      %v399 = vld [vmem:[%s266 + $0x28] sm:$0xff]
      %v400 = vld [vmem:[%s266 + $0x30] sm:$0xff]
      %v401 = vld [vmem:[%s266 + $0x38] sm:$0xff]
      %v402 = vld [vmem:[%s266 + $0x40] sm:$0xff]
      %v403 = vld [vmem:[%s266 + $0x48] sm:$0xff]
      %v404 = vld [vmem:[%s266 + $0x50] sm:$0xff]
      %v405 = vld [vmem:[%s266 + $0x58] sm:$0xff]
      %v406 = vld [vmem:[%s266 + $0x60] sm:$0xff]
      %v407 = vld [vmem:[%s266 + $0x68] sm:$0xff]
      %v408 = vld [vmem:[%s266 + $0x70] sm:$0xff]
      %v409 = vld [vmem:[%s266 + $0x78] sm:$0xff]
      %v410 = vld [vmem:[%s269] sm:$0x1]
      %v412 = vlaneseq
      %v413 = vshrl.u32 %v412, 7
      %v414 = vsub.s32 0, %v413
      %v415 = vrot.slane %v410, %v414
      %417 = vmatprep.subr.mxu0 0.0
      %418 = vmatpush1.msra.mxu0 %v394
      %419 = vmatprep.subr.mxu0 0.0
      %420 = vmatpush1.msra.mxu0 %v395
      %421 = vmatprep.subr.mxu0 0.0
      %422 = vmatpush1.msra.mxu0 %v396
      %423 = vmatprep.subr.mxu0 0.0
      %424 = vmatpush1.msra.mxu0 %v397
      %425 = vmatprep.subr.mxu0 0.0
      %426 = vmatpush1.msra.mxu0 %v398
      %427 = vmatprep.subr.mxu0 0.0
      %428 = vmatpush1.msra.mxu0 %v399
      %429 = vmatprep.subr.mxu0 0.0
      %430 = vmatpush1.msra.mxu0 %v400
      %431 = vmatprep.subr.mxu0 0.0
      %432 = vmatpush1.msra.mxu0 %v401
      %433 = vmatprep.subr.mxu0 0.0
      %434 = vmatpush1.msra.mxu0 %v402
      %435 = vmatprep.subr.mxu0 0.0
      %436 = vmatpush1.msra.mxu0 %v403
      %437 = vmatprep.subr.mxu0 0.0
      %438 = vmatpush1.msra.mxu0 %v404
      %439 = vmatprep.subr.mxu0 0.0
      %440 = vmatpush1.msra.mxu0 %v405
      %441 = vmatprep.subr.mxu0 0.0
      %442 = vmatpush1.msra.mxu0 %v406
      %443 = vmatprep.subr.mxu0 0.0
      %444 = vmatpush1.msra.mxu0 %v407
      %445 = vmatprep.subr.mxu0 0.0
      %446 = vmatpush1.msra.mxu0 %v408
      %447 = vmatprep.subr.mxu0 0.0
      %448 = vmatpush1.msra.mxu0 %v409
      %449 = vmatprep.subr.mxu0 0.0
      %450 = vmatpush1.msra.mxu0 0.0
      %451 = vmatprep.subr.mxu0 0.0
      %452 = vmatpush1.msra.mxu0 0.0
      %453 = vmatprep.subr.mxu0 0.0
      %454 = vmatpush1.msra.mxu0 0.0
      %455 = vmatprep.subr.mxu0 0.0
      %456 = vmatpush1.msra.mxu0 0.0
      %457 = vmatprep.subr.mxu0 0.0
      %458 = vmatpush1.msra.mxu0 0.0
      %459 = vmatprep.subr.mxu0 0.0
      %460 = vmatpush1.msra.mxu0 0.0
      %461 = vmatprep.subr.mxu0 0.0
      %462 = vmatpush1.msra.mxu0 0.0
      %463 = vmatprep.subr.mxu0 0.0
      %464 = vmatpush1.msra.mxu0 0.0
      %465 = vmatprep.subr.mxu0 0.0
      %466 = vmatpush1.msra.mxu0 0.0
      %467 = vmatprep.subr.mxu0 0.0
      %468 = vmatpush1.msra.mxu0 0.0
      %469 = vmatprep.subr.mxu0 0.0
      %470 = vmatpush1.msra.mxu0 0.0
      %471 = vmatprep.subr.mxu0 0.0
      %472 = vmatpush1.msra.mxu0 0.0
      %473 = vmatprep.subr.mxu0 0.0
      %474 = vmatpush1.msra.mxu0 0.0
      %475 = vmatprep.subr.mxu0 0.0
      %476 = vmatpush1.msra.mxu0 0.0
      %477 = vmatprep.subr.mxu0 0.0
      %478 = vmatpush1.msra.mxu0 0.0
      %479 = vmatprep.subr.mxu0 0.0
      %480 = vmatpush1.msra.mxu0 0.0
      %481 = vmatprep.mubr.f32.mxu0 0.0
      %482 = vmatmul.mubr.f32.gmra.mrb[0].mxu0 %v390
      %v483 = vpop.f32.mrb[0].mxu0
      %v484 = vadd.f32 %v415, %v483
      %v485 = vpop.f32.mrb[0].mxu0
      %486 = vmatprep.mubr.f32.mxu0 0.0
      %487 = vmatmul.mubr.f32.gmra.mrb[0].mxu0 %v391
      %v488 = vpop.f32.mrb[0].mxu0
      %v489 = vadd.f32 %v415, %v488
      %v490 = vpop.f32.mrb[0].mxu0
      %491 = vmatprep.mubr.f32.mxu0 0.0
      %492 = vmatmul.mubr.f32.gmra.mrb[0].mxu0 %v392
      %v493 = vpop.f32.mrb[0].mxu0
      %v494 = vadd.f32 %v415, %v493
      %v495 = vpop.f32.mrb[0].mxu0
      %496 = vmatprep.mubr.f32.mxu0 0.0
      %497 = vmatmul.mubr.f32.gmra.mrb[0].mxu0 %v393
      %v498 = vpop.f32.mrb[0].mxu0
      %v499 = vadd.f32 %v415, %v498
      %v500 = vpop.f32.mrb[0].mxu0
      %501 = vdwg.mxu0
      %vm502 = vcmask 261120
      %503 = vst.msk [vmem:[%s277] sm:$0xff] %vm502, %v484
      %504 = vst.msk [vmem:[%s277 + $0x8] sm:$0xff] %vm502, %v489
      %505 = vst.msk [vmem:[%s277 + $0x10] sm:$0xff] %vm502, %v494
      %506 = vst.msk [vmem:[%s277 + $0x18] sm:$0xff] %vm502, %v499
      %s507 = smul.u32 4, %s20
      %p508 = scmp.lt.s32.totalorder %s507, 7
      %s509 = scalar_select %p508, %s507, 7
      %p510 = scmp.lt.s32.totalorder %s21, 0
      %s511 = scalar_select %p510, %s21, 0
      %s512 = sadd.s32 %s511, %s509
      %s513 = smul.addr %s512, 8
      %s514 = scalar_lea.vmem %s5, %s513
      // Predicated region
      $region41: #{generator_forward.1} parent=39 // pred_check
        %p515 = pneg %p168
      $region42: #{generator_forward.1} parent=39 // pred_check_branch
        %517 = sbr.rel (%p515) target = $region44
      $region43: #{generator_forward.1} parent=39 // pred_region
        %s518 = smul.u32 4, %s20
      $region44: #{generator_forward.1} parent=39 // pred_fallthru
        _
    $region40: #{generator_forward.1} parent=5 // pred_fallthru
      _
    %p519 = scmp.le.s32.totalorder 2, %s11
    // Predicated region
    $region45: #{generator_forward.1} parent=5 // pred_check
      %p520 = pneg %p519
    $region46: #{generator_forward.1} parent=5 // pred_check_branch
      %522 = sbr.rel (%p520) target = $region48
    $region47: #{generator_forward.1} parent=5 // pred_region
      %s523 = ssub.s32 %s11, 2
      // Predicated region
      $region49: #{generator_forward.1} parent=47 // pred_check
        %p524 = pneg %p174
      $region50: #{generator_forward.1} parent=47 // pred_check_branch
        %526 = sbr.rel (%p524) target = $region52
      $region51: #{generator_forward.1} parent=47 // pred_region
        %s527 = smul.u32 4, %s22
        %p528 = scmp.lt.s32.totalorder %s527, 7
        %s529 = scalar_select %p528, %s527, 7
        %p530 = scmp.lt.s32.totalorder %s23, 0
        %s531 = scalar_select %p530, %s23, 0
        %s532 = sadd.s32 %s531, %s529
        %s533 = smul.addr %s532, 8
        %s534 = scalar_lea.vmem %s5, %s533
      $region52: #{generator_forward.1} parent=47 // pred_fallthru
        _
    $region48: #{generator_forward.1} parent=5 // pred_fallthru
      _
  $region6: #{generator_forward.1} parent=0 // loop_footer
    %s15 = sadd.s32 1, %s11
  $region7: #{generator_forward.1} parent=0 // loop_footer_branch
    %10 = sbr.rel target = $region3
  $region8: #{generator_forward.1} parent=0 // loop_exit
    _

</llo_original>
